<compile_context>
chip_gen: v7x
topology: tpu7x:2x2x1
jax: 0.10.0
libtpu: 0.0.40
codegen_flags: <defaults>
</compile_context>

<pallas_src>
import functools

import jax
import jax.numpy as jnp
from jax.experimental import pallas as pl
from jax.experimental.pallas import tpu as pltpu

# small, config-consistent test sizes (n = h36m_input_length_dct, d = motion.dim)
B, N, D, L = 4, 8, 32, 4
LANE = 128                      # TPU lane width; G = LANE // D samples per group
LN_EPS = 1e-5
_CDT = jnp.bfloat16             # matmul operand dtype (accumulation stays f32)


def simlpe_kernel(num_layers, n,
                  x_ref,        # (N, 128)        bf16  packed group: [b0 dims | b1 dims | ...]
                  w_in_ref,     # (128, 128)      bf16  block-diag(W_in^T)
                  b_in_ref,     # (N, 128)        f32   fc_in bias, pre-broadcast
                  w_l_ref,      # (L, N, N)       bf16  temporal fc weights
                  b_l_ref,      # (L, N, 128)     f32   temporal fc biases, pre-broadcast
                  alpha_ref,    # (L, N, 128)     f32   LN scale, pre-broadcast
                  beta_ref,     # (L, N, 128)     f32   LN shift, pre-broadcast
                  p_ref,        # (128, 128)      bf16  block-diag per-sample 1/D averaging
                  w_out_ref,    # (128, 128)      bf16  block-diag(W_out^T)
                  b_out_ref,    # (N, 128)        f32   fc_out bias, pre-broadcast
                  o_ref):       # (N, 128)        f32   packed output
    p = p_ref[...]

    # motion_fc_in over d: one MXU pass covers the whole 128-lane batch group
    feats = jnp.dot(x_ref[...], w_in_ref[...],
                    preferred_element_type=jnp.float32) + b_in_ref[...]

    # TransMLP: num_layers x (temporal FC over n + LayerNorm over d + residual)
    for l in range(num_layers):
        # temporal fc: (N,N) @ (N,128), one pass for the whole group
        x_ = jnp.dot(w_l_ref[l], feats.astype(_CDT),
                     preferred_element_type=jnp.float32) + b_l_ref[l]

        # LayerNorm over the d axis: E[x] and E[x^2] from ONE stacked MXU pass
        # (no serial mean -> var dependency); combine and normalize in f32.
        xs = jnp.concatenate([x_, x_ * x_], axis=0).astype(_CDT)      # (2N, 128)
        stats = jnp.dot(xs, p, preferred_element_type=jnp.float32)    # (2N, 128)
        mu = stats[:n]
        var = stats[n:] - mu * mu                                     # biased variance
        xn = (x_ - mu) * jax.lax.rsqrt(var + LN_EPS)                  # EUP rsqrt
        feats = feats + xn * alpha_ref[l] + beta_ref[l]               # affine + residual

    # motion_fc_out over d: one MXU pass for the whole group
    o_ref[...] = (jnp.dot(feats.astype(_CDT), w_out_ref[...],
                          preferred_element_type=jnp.float32) + b_out_ref[...])


def pack_simlpe_params(params, n, d):
    """One-time host-side packing of siMLPe weights into MXU-ready, lane-dense slabs.

    Call once at parameter-load time; simlpe_forward only touches the activation.
    """
    assert LANE % d == 0, "pad the feature dim to a divisor of 128 first"
    g = LANE // d                                   # samples packed per 128-lane group
    num_layers = params["w_l"].shape[0]
    f32 = jnp.float32
    eye_g = jnp.eye(g, dtype=f32)

    def blk(w):  # x_pack @ blockdiag(W^T) == per-sample x @ W^T
        return jnp.kron(eye_g, w.T.astype(f32)).astype(_CDT)          # (128,128)

    alpha_t = jnp.tile(params["alpha"].astype(f32), (1, g))           # (L,128)
    beta_t = jnp.tile(params["beta"].astype(f32), (1, g))             # (L,128)
    return dict(
        w_in=blk(params["w_in"]),
        w_out=blk(params["w_out"]),
        p_avg=jnp.kron(eye_g, jnp.full((d, d), 1.0 / d, f32)).astype(_CDT),
        b_in=jnp.tile(params["b_in"].reshape(1, d).astype(f32), (n, g)),
        b_out=jnp.tile(params["b_out"].reshape(1, d).astype(f32), (n, g)),
        w_l=params["w_l"].astype(_CDT),
        b_l=jnp.tile(params["b_l"].reshape(num_layers, n, 1).astype(f32), (1, 1, LANE)),
        alpha=jnp.tile(alpha_t[:, None, :], (1, n, 1)),
        beta=jnp.tile(beta_t[:, None, :], (1, n, 1)),
    )


def simlpe_forward(x, packed):
    b, n, d = x.shape
    num_layers = packed["w_l"].shape[0]
    g = LANE // d
    num_groups = pl.cdiv(b, g)
    bp = num_groups * g

    # per-call layout plumbing only touches the activation: pad the batch to whole
    # 128-lane groups and pack (b,n,d) -> (n, num_groups*128) lane-dense bf16.
    xp = x if bp == b else jnp.pad(x, ((0, bp - b), (0, 0), (0, 0)))
    x_pack = jnp.transpose(xp, (1, 0, 2)).reshape(n, bp * d).astype(_CDT)

    def const(*shape):  # weight slab resident across the (parallel) batch-group grid
        return pl.BlockSpec(shape, lambda grp: (0,) * len(shape))

    flops = num_groups * (2 * 2 * n * LANE * LANE                       # fc_in + fc_out
                          + num_layers * (2 * n * n * LANE              # temporal fc
                                          + 2 * 2 * n * LANE * LANE))   # stacked LN stats
    param_bytes = sum(int(a.size) * a.dtype.itemsize for a in packed.values())
    bytes_accessed = int(x_pack.size) * 2 + n * bp * d * 4 + param_bytes

    out_pack = pl.pallas_call(
        functools.partial(simlpe_kernel, num_layers, n),
        grid=(num_groups,),
        out_shape=jax.ShapeDtypeStruct((n, bp * d), jnp.float32),
        in_specs=[
            pl.BlockSpec((n, LANE), lambda grp: (0, grp)),   # x: one group per step
            const(LANE, LANE),                               # w_in block-diag
            const(n, LANE),                                  # b_in
            const(num_layers, n, n),                         # w_l
            const(num_layers, n, LANE),                      # b_l
            const(num_layers, n, LANE),                      # alpha
            const(num_layers, n, LANE),                      # beta
            const(LANE, LANE),                               # p_avg
            const(LANE, LANE),                               # w_out block-diag
            const(n, LANE),                                  # b_out
        ],
        out_specs=pl.BlockSpec((n, LANE), lambda grp: (0, grp)),
        compiler_params=pltpu.CompilerParams(
            dimension_semantics=("parallel",)),              # megacore on v7x
        cost_estimate=pl.CostEstimate(
            flops=flops,
            transcendentals=num_groups * num_layers * n * LANE,
            bytes_accessed=bytes_accessed),
    )(x_pack, packed["w_in"], packed["b_in"], packed["w_l"], packed["b_l"],
      packed["alpha"], packed["beta"], packed["p_avg"], packed["w_out"],
      packed["b_out"])

    # unpack output: (n, num_groups*128) -> (b, n, d)
    out = jnp.transpose(out_pack.reshape(n, bp, d), (1, 0, 2))
    return out[:b]


def simlpe_reference(x, params):
    """Pure-JAX f32 reference mirroring the PyTorch forward."""
    y = x @ params["w_in"].T + params["b_in"][0]
    feats = jnp.transpose(y, (0, 2, 1))                               # (b, d, n)
    num_layers = params["w_l"].shape[0]
    for l in range(num_layers):
        x_ = feats @ params["w_l"][l].T + params["b_l"][l]
        mean = x_.mean(axis=1, keepdims=True)
        var = ((x_ - mean) ** 2).mean(axis=1, keepdims=True)
        xn = (x_ - mean) / jnp.sqrt(var + LN_EPS)
        xn = xn * params["alpha"][l][None, :, None] + params["beta"][l][None, :, None]
        feats = feats + xn
    out = jnp.transpose(feats, (0, 2, 1))
    return out @ params["w_out"].T + params["b_out"][0]


def make_params(key):
    # NOTE: the PyTorch module inits fc_out / temporal fcs with xavier(gain=1e-8);
    # the forward math is identical regardless of init, so the self-test uses
    # O(1)-scale weights to actually exercise the temporal-fc / LayerNorm path.
    ks = jax.random.split(key, 8)
    w_in = jax.random.normal(ks[0], (D, D), jnp.float32) * 0.15
    b_in = jax.random.normal(ks[1], (1, D), jnp.float32) * 0.1
    w_l = jax.random.normal(ks[2], (L, N, N), jnp.float32) * 0.3
    b_l = jax.random.normal(ks[3], (L, N), jnp.float32) * 0.05
    alpha = 1.0 + 0.1 * jax.random.normal(ks[4], (L, D), jnp.float32)
    beta = 0.05 * jax.random.normal(ks[5], (L, D), jnp.float32)
    w_out = jax.random.normal(ks[6], (D, D), jnp.float32) * 0.15
    b_out = jax.random.normal(ks[7], (1, D), jnp.float32) * 0.1
    return dict(w_in=w_in, b_in=b_in, w_l=w_l, b_l=b_l,
                alpha=alpha, beta=beta, w_out=w_out, b_out=b_out)


if __name__ == "__main__":
    key = jax.random.PRNGKey(0)
    k_x, k_p = jax.random.split(key)
    x = jax.random.normal(k_x, (B, N, D), jnp.float32)
    params = make_params(k_p)

    # weight packing happens ONCE (outside the per-call path)
    packed = pack_simlpe_params(params, N, D)

    fwd = jax.jit(simlpe_forward)
    out = jax.block_until_ready(fwd(x, packed))

    ref = simlpe_reference(x, params)
    assert out.shape == (B, N, D)
    # bf16 matmul operands vs f32 reference -> compare with a bf16-appropriate bound
    rel_err = float(jnp.max(jnp.abs(out - ref)) / (jnp.max(jnp.abs(ref)) + 1e-8))
    assert rel_err < 5e-2, f"mismatch vs reference: rel_err={rel_err}"

    print("KERNEL_OK")
</pallas_src>

<mosaic_0001>
module attributes {stable_mosaic.version = 11 : i64} {
  func.func @simlpe_kernel(%arg0: i32, %arg1: memref<8x128xbf16, #tpu.memory_space<vmem>>, %arg2: memref<128x128xbf16, #tpu.memory_space<vmem>>, %arg3: memref<8x128xf32, #tpu.memory_space<vmem>>, %arg4: memref<4x8x8xbf16, #tpu.memory_space<vmem>>, %arg5: memref<4x8x128xf32, #tpu.memory_space<vmem>>, %arg6: memref<4x8x128xf32, #tpu.memory_space<vmem>>, %arg7: memref<4x8x128xf32, #tpu.memory_space<vmem>>, %arg8: memref<128x128xbf16, #tpu.memory_space<vmem>>, %arg9: memref<128x128xbf16, #tpu.memory_space<vmem>>, %arg10: memref<8x128xf32, #tpu.memory_space<vmem>>, %arg11: memref<8x128xf32, #tpu.memory_space<vmem>>) attributes {dimension_semantics = [#tpu.dimension_semantics<parallel>], iteration_bounds = array<i64: 1>, scalar_prefetch = 0 : i64, scratch_operands = 0 : i64, tpu.core_type = #tpu.core_type<tc>, window_params = [{transform_indices = @transform_0, window_bounds = array<i64: 8, 128>}, {pipeline_mode = #tpu.pipeline_mode<synchronous>, transform_indices = @transform_1, window_bounds = array<i64: 128, 128>}, {pipeline_mode = #tpu.pipeline_mode<synchronous>, transform_indices = @transform_2, window_bounds = array<i64: 8, 128>}, {pipeline_mode = #tpu.pipeline_mode<synchronous>, transform_indices = @transform_3, window_bounds = array<i64: 4, 8, 8>}, {pipeline_mode = #tpu.pipeline_mode<synchronous>, transform_indices = @transform_4, window_bounds = array<i64: 4, 8, 128>}, {pipeline_mode = #tpu.pipeline_mode<synchronous>, transform_indices = @transform_5, window_bounds = array<i64: 4, 8, 128>}, {pipeline_mode = #tpu.pipeline_mode<synchronous>, transform_indices = @transform_6, window_bounds = array<i64: 4, 8, 128>}, {pipeline_mode = #tpu.pipeline_mode<synchronous>, transform_indices = @transform_7, window_bounds = array<i64: 128, 128>}, {pipeline_mode = #tpu.pipeline_mode<synchronous>, transform_indices = @transform_8, window_bounds = array<i64: 128, 128>}, {pipeline_mode = #tpu.pipeline_mode<synchronous>, transform_indices = @transform_9, window_bounds = array<i64: 8, 128>}, {transform_indices = @transform_10, window_bounds = array<i64: 8, 128>}]} {
    %c0 = arith.constant 0 : index
    %c0_0 = arith.constant 0 : index
    %0 = vector.load %arg8[%c0, %c0_0] : memref<128x128xbf16, #tpu.memory_space<vmem>>, vector<128x128xbf16>
    %c0_1 = arith.constant 0 : index
    %c0_2 = arith.constant 0 : index
    %1 = vector.load %arg1[%c0_1, %c0_2] : memref<8x128xbf16, #tpu.memory_space<vmem>>, vector<8x128xbf16>
    %c0_3 = arith.constant 0 : index
    %c0_4 = arith.constant 0 : index
    %2 = vector.load %arg2[%c0_3, %c0_4] : memref<128x128xbf16, #tpu.memory_space<vmem>>, vector<128x128xbf16>
    %cst = arith.constant dense<0.000000e+00> : vector<8x128xf32>
    %3 = tpu.matmul %1, %2, %cst {dimension_numbers = #tpu.dot_dimension_numbers<[1], [0], [0], [1], [0, 0, 1, 1], [], []>} : vector<8x128xbf16>, vector<128x128xbf16>, vector<8x128xf32> -> vector<8x128xf32>
    %c0_5 = arith.constant 0 : index
    %c0_6 = arith.constant 0 : index
    %4 = vector.load %arg3[%c0_5, %c0_6] : memref<8x128xf32, #tpu.memory_space<vmem>>, vector<8x128xf32>
    %5 = arith.addf %3, %4 : vector<8x128xf32>
    %c0_7 = arith.constant 0 : index
    %c0_8 = arith.constant 0 : index
    %c0_9 = arith.constant 0 : index
    %6 = vector.load %arg4[%c0_7, %c0_8, %c0_9] : memref<4x8x8xbf16, #tpu.memory_space<vmem>>, vector<1x8x8xbf16>
    %7 = vector.shape_cast %6 : vector<1x8x8xbf16> to vector<8x8xbf16>
    %8 = arith.truncf %5 : vector<8x128xf32> to vector<8x128xbf16>
    %cst_10 = arith.constant dense<0.000000e+00> : vector<8x128xf32>
    %9 = tpu.matmul %7, %8, %cst_10 {dimension_numbers = #tpu.dot_dimension_numbers<[1], [0], [0], [1], [0, 0, 1, 1], [], []>} : vector<8x8xbf16>, vector<8x128xbf16>, vector<8x128xf32> -> vector<8x128xf32>
    %c0_11 = arith.constant 0 : index
    %c0_12 = arith.constant 0 : index
    %c0_13 = arith.constant 0 : index
    %10 = vector.load %arg5[%c0_11, %c0_12, %c0_13] : memref<4x8x128xf32, #tpu.memory_space<vmem>>, vector<1x8x128xf32>
    %11 = vector.shape_cast %10 : vector<1x8x128xf32> to vector<8x128xf32>
    %12 = arith.addf %9, %11 : vector<8x128xf32>
    %13 = arith.mulf %12, %12 : vector<8x128xf32>
    %14 = tpu.concatenate %12, %13 in 0 : vector<8x128xf32>, vector<8x128xf32> -> vector<16x128xf32>
    %15 = arith.truncf %14 : vector<16x128xf32> to vector<16x128xbf16>
    %cst_14 = arith.constant dense<0.000000e+00> : vector<16x128xf32>
    %16 = tpu.matmul %15, %0, %cst_14 {dimension_numbers = #tpu.dot_dimension_numbers<[1], [0], [0], [1], [0, 0, 1, 1], [], []>} : vector<16x128xbf16>, vector<128x128xbf16>, vector<16x128xf32> -> vector<16x128xf32>
    %17 = vector.extract_strided_slice %16 {offsets = [0, 0], sizes = [8, 128], strides = [1, 1]} : vector<16x128xf32> to vector<8x128xf32>
    %18 = vector.extract_strided_slice %16 {offsets = [8, 0], sizes = [8, 128], strides = [1, 1]} : vector<16x128xf32> to vector<8x128xf32>
    %19 = arith.mulf %17, %17 : vector<8x128xf32>
    %20 = arith.subf %18, %19 : vector<8x128xf32>
    %21 = arith.subf %12, %17 : vector<8x128xf32>
    %cst_15 = arith.constant 9.99999974E-6 : f32
    %22 = vector.broadcast %cst_15 : f32 to vector<8x128xf32>
    %23 = arith.addf %20, %22 : vector<8x128xf32>
    %24 = math.rsqrt %23 : vector<8x128xf32>
    %25 = arith.mulf %21, %24 : vector<8x128xf32>
    %c0_16 = arith.constant 0 : index
    %c0_17 = arith.constant 0 : index
    %c0_18 = arith.constant 0 : index
    %26 = vector.load %arg6[%c0_16, %c0_17, %c0_18] : memref<4x8x128xf32, #tpu.memory_space<vmem>>, vector<1x8x128xf32>
    %27 = vector.shape_cast %26 : vector<1x8x128xf32> to vector<8x128xf32>
    %28 = arith.mulf %25, %27 : vector<8x128xf32>
    %29 = arith.addf %5, %28 : vector<8x128xf32>
    %c0_19 = arith.constant 0 : index
    %c0_20 = arith.constant 0 : index
    %c0_21 = arith.constant 0 : index
    %30 = vector.load %arg7[%c0_19, %c0_20, %c0_21] : memref<4x8x128xf32, #tpu.memory_space<vmem>>, vector<1x8x128xf32>
    %31 = vector.shape_cast %30 : vector<1x8x128xf32> to vector<8x128xf32>
    %32 = arith.addf %29, %31 : vector<8x128xf32>
    %c1 = arith.constant 1 : index
    %c0_22 = arith.constant 0 : index
    %c0_23 = arith.constant 0 : index
    %33 = vector.load %arg4[%c1, %c0_22, %c0_23] : memref<4x8x8xbf16, #tpu.memory_space<vmem>>, vector<1x8x8xbf16>
    %34 = vector.shape_cast %33 : vector<1x8x8xbf16> to vector<8x8xbf16>
    %35 = arith.truncf %32 : vector<8x128xf32> to vector<8x128xbf16>
    %cst_24 = arith.constant dense<0.000000e+00> : vector<8x128xf32>
    %36 = tpu.matmul %34, %35, %cst_24 {dimension_numbers = #tpu.dot_dimension_numbers<[1], [0], [0], [1], [0, 0, 1, 1], [], []>} : vector<8x8xbf16>, vector<8x128xbf16>, vector<8x128xf32> -> vector<8x128xf32>
    %c1_25 = arith.constant 1 : index
    %c0_26 = arith.constant 0 : index
    %c0_27 = arith.constant 0 : index
    %37 = vector.load %arg5[%c1_25, %c0_26, %c0_27] : memref<4x8x128xf32, #tpu.memory_space<vmem>>, vector<1x8x128xf32>
    %38 = vector.shape_cast %37 : vector<1x8x128xf32> to vector<8x128xf32>
    %39 = arith.addf %36, %38 : vector<8x128xf32>
    %40 = arith.mulf %39, %39 : vector<8x128xf32>
    %41 = tpu.concatenate %39, %40 in 0 : vector<8x128xf32>, vector<8x128xf32> -> vector<16x128xf32>
    %42 = arith.truncf %41 : vector<16x128xf32> to vector<16x128xbf16>
    %cst_28 = arith.constant dense<0.000000e+00> : vector<16x128xf32>
    %43 = tpu.matmul %42, %0, %cst_28 {dimension_numbers = #tpu.dot_dimension_numbers<[1], [0], [0], [1], [0, 0, 1, 1], [], []>} : vector<16x128xbf16>, vector<128x128xbf16>, vector<16x128xf32> -> vector<16x128xf32>
    %44 = vector.extract_strided_slice %43 {offsets = [0, 0], sizes = [8, 128], strides = [1, 1]} : vector<16x128xf32> to vector<8x128xf32>
    %45 = vector.extract_strided_slice %43 {offsets = [8, 0], sizes = [8, 128], strides = [1, 1]} : vector<16x128xf32> to vector<8x128xf32>
    %46 = arith.mulf %44, %44 : vector<8x128xf32>
    %47 = arith.subf %45, %46 : vector<8x128xf32>
    %48 = arith.subf %39, %44 : vector<8x128xf32>
    %cst_29 = arith.constant 9.99999974E-6 : f32
    %49 = vector.broadcast %cst_29 : f32 to vector<8x128xf32>
    %50 = arith.addf %47, %49 : vector<8x128xf32>
    %51 = math.rsqrt %50 : vector<8x128xf32>
    %52 = arith.mulf %48, %51 : vector<8x128xf32>
    %c1_30 = arith.constant 1 : index
    %c0_31 = arith.constant 0 : index
    %c0_32 = arith.constant 0 : index
    %53 = vector.load %arg6[%c1_30, %c0_31, %c0_32] : memref<4x8x128xf32, #tpu.memory_space<vmem>>, vector<1x8x128xf32>
    %54 = vector.shape_cast %53 : vector<1x8x128xf32> to vector<8x128xf32>
    %55 = arith.mulf %52, %54 : vector<8x128xf32>
    %56 = arith.addf %32, %55 : vector<8x128xf32>
    %c1_33 = arith.constant 1 : index
    %c0_34 = arith.constant 0 : index
    %c0_35 = arith.constant 0 : index
    %57 = vector.load %arg7[%c1_33, %c0_34, %c0_35] : memref<4x8x128xf32, #tpu.memory_space<vmem>>, vector<1x8x128xf32>
    %58 = vector.shape_cast %57 : vector<1x8x128xf32> to vector<8x128xf32>
    %59 = arith.addf %56, %58 : vector<8x128xf32>
    %c2 = arith.constant 2 : index
    %c0_36 = arith.constant 0 : index
    %c0_37 = arith.constant 0 : index
    %60 = vector.load %arg4[%c2, %c0_36, %c0_37] : memref<4x8x8xbf16, #tpu.memory_space<vmem>>, vector<1x8x8xbf16>
    %61 = vector.shape_cast %60 : vector<1x8x8xbf16> to vector<8x8xbf16>
    %62 = arith.truncf %59 : vector<8x128xf32> to vector<8x128xbf16>
    %cst_38 = arith.constant dense<0.000000e+00> : vector<8x128xf32>
    %63 = tpu.matmul %61, %62, %cst_38 {dimension_numbers = #tpu.dot_dimension_numbers<[1], [0], [0], [1], [0, 0, 1, 1], [], []>} : vector<8x8xbf16>, vector<8x128xbf16>, vector<8x128xf32> -> vector<8x128xf32>
    %c2_39 = arith.constant 2 : index
    %c0_40 = arith.constant 0 : index
    %c0_41 = arith.constant 0 : index
    %64 = vector.load %arg5[%c2_39, %c0_40, %c0_41] : memref<4x8x128xf32, #tpu.memory_space<vmem>>, vector<1x8x128xf32>
    %65 = vector.shape_cast %64 : vector<1x8x128xf32> to vector<8x128xf32>
    %66 = arith.addf %63, %65 : vector<8x128xf32>
    %67 = arith.mulf %66, %66 : vector<8x128xf32>
    %68 = tpu.concatenate %66, %67 in 0 : vector<8x128xf32>, vector<8x128xf32> -> vector<16x128xf32>
    %69 = arith.truncf %68 : vector<16x128xf32> to vector<16x128xbf16>
    %cst_42 = arith.constant dense<0.000000e+00> : vector<16x128xf32>
    %70 = tpu.matmul %69, %0, %cst_42 {dimension_numbers = #tpu.dot_dimension_numbers<[1], [0], [0], [1], [0, 0, 1, 1], [], []>} : vector<16x128xbf16>, vector<128x128xbf16>, vector<16x128xf32> -> vector<16x128xf32>
    %71 = vector.extract_strided_slice %70 {offsets = [0, 0], sizes = [8, 128], strides = [1, 1]} : vector<16x128xf32> to vector<8x128xf32>
    %72 = vector.extract_strided_slice %70 {offsets = [8, 0], sizes = [8, 128], strides = [1, 1]} : vector<16x128xf32> to vector<8x128xf32>
    %73 = arith.mulf %71, %71 : vector<8x128xf32>
    %74 = arith.subf %72, %73 : vector<8x128xf32>
    %75 = arith.subf %66, %71 : vector<8x128xf32>
    %cst_43 = arith.constant 9.99999974E-6 : f32
    %76 = vector.broadcast %cst_43 : f32 to vector<8x128xf32>
    %77 = arith.addf %74, %76 : vector<8x128xf32>
    %78 = math.rsqrt %77 : vector<8x128xf32>
    %79 = arith.mulf %75, %78 : vector<8x128xf32>
    %c2_44 = arith.constant 2 : index
    %c0_45 = arith.constant 0 : index
    %c0_46 = arith.constant 0 : index
    %80 = vector.load %arg6[%c2_44, %c0_45, %c0_46] : memref<4x8x128xf32, #tpu.memory_space<vmem>>, vector<1x8x128xf32>
    %81 = vector.shape_cast %80 : vector<1x8x128xf32> to vector<8x128xf32>
    %82 = arith.mulf %79, %81 : vector<8x128xf32>
    %83 = arith.addf %59, %82 : vector<8x128xf32>
    %c2_47 = arith.constant 2 : index
    %c0_48 = arith.constant 0 : index
    %c0_49 = arith.constant 0 : index
    %84 = vector.load %arg7[%c2_47, %c0_48, %c0_49] : memref<4x8x128xf32, #tpu.memory_space<vmem>>, vector<1x8x128xf32>
    %85 = vector.shape_cast %84 : vector<1x8x128xf32> to vector<8x128xf32>
    %86 = arith.addf %83, %85 : vector<8x128xf32>
    %c3 = arith.constant 3 : index
    %c0_50 = arith.constant 0 : index
    %c0_51 = arith.constant 0 : index
    %87 = vector.load %arg4[%c3, %c0_50, %c0_51] : memref<4x8x8xbf16, #tpu.memory_space<vmem>>, vector<1x8x8xbf16>
    %88 = vector.shape_cast %87 : vector<1x8x8xbf16> to vector<8x8xbf16>
    %89 = arith.truncf %86 : vector<8x128xf32> to vector<8x128xbf16>
    %cst_52 = arith.constant dense<0.000000e+00> : vector<8x128xf32>
    %90 = tpu.matmul %88, %89, %cst_52 {dimension_numbers = #tpu.dot_dimension_numbers<[1], [0], [0], [1], [0, 0, 1, 1], [], []>} : vector<8x8xbf16>, vector<8x128xbf16>, vector<8x128xf32> -> vector<8x128xf32>
    %c3_53 = arith.constant 3 : index
    %c0_54 = arith.constant 0 : index
    %c0_55 = arith.constant 0 : index
    %91 = vector.load %arg5[%c3_53, %c0_54, %c0_55] : memref<4x8x128xf32, #tpu.memory_space<vmem>>, vector<1x8x128xf32>
    %92 = vector.shape_cast %91 : vector<1x8x128xf32> to vector<8x128xf32>
    %93 = arith.addf %90, %92 : vector<8x128xf32>
    %94 = arith.mulf %93, %93 : vector<8x128xf32>
    %95 = tpu.concatenate %93, %94 in 0 : vector<8x128xf32>, vector<8x128xf32> -> vector<16x128xf32>
    %96 = arith.truncf %95 : vector<16x128xf32> to vector<16x128xbf16>
    %cst_56 = arith.constant dense<0.000000e+00> : vector<16x128xf32>
    %97 = tpu.matmul %96, %0, %cst_56 {dimension_numbers = #tpu.dot_dimension_numbers<[1], [0], [0], [1], [0, 0, 1, 1], [], []>} : vector<16x128xbf16>, vector<128x128xbf16>, vector<16x128xf32> -> vector<16x128xf32>
    %98 = vector.extract_strided_slice %97 {offsets = [0, 0], sizes = [8, 128], strides = [1, 1]} : vector<16x128xf32> to vector<8x128xf32>
    %99 = vector.extract_strided_slice %97 {offsets = [8, 0], sizes = [8, 128], strides = [1, 1]} : vector<16x128xf32> to vector<8x128xf32>
    %100 = arith.mulf %98, %98 : vector<8x128xf32>
    %101 = arith.subf %99, %100 : vector<8x128xf32>
    %102 = arith.subf %93, %98 : vector<8x128xf32>
    %cst_57 = arith.constant 9.99999974E-6 : f32
    %103 = vector.broadcast %cst_57 : f32 to vector<8x128xf32>
    %104 = arith.addf %101, %103 : vector<8x128xf32>
    %105 = math.rsqrt %104 : vector<8x128xf32>
    %106 = arith.mulf %102, %105 : vector<8x128xf32>
    %c3_58 = arith.constant 3 : index
    %c0_59 = arith.constant 0 : index
    %c0_60 = arith.constant 0 : index
    %107 = vector.load %arg6[%c3_58, %c0_59, %c0_60] : memref<4x8x128xf32, #tpu.memory_space<vmem>>, vector<1x8x128xf32>
    %108 = vector.shape_cast %107 : vector<1x8x128xf32> to vector<8x128xf32>
    %109 = arith.mulf %106, %108 : vector<8x128xf32>
    %110 = arith.addf %86, %109 : vector<8x128xf32>
    %c3_61 = arith.constant 3 : index
    %c0_62 = arith.constant 0 : index
    %c0_63 = arith.constant 0 : index
    %111 = vector.load %arg7[%c3_61, %c0_62, %c0_63] : memref<4x8x128xf32, #tpu.memory_space<vmem>>, vector<1x8x128xf32>
    %112 = vector.shape_cast %111 : vector<1x8x128xf32> to vector<8x128xf32>
    %113 = arith.addf %110, %112 : vector<8x128xf32>
    %114 = arith.truncf %113 : vector<8x128xf32> to vector<8x128xbf16>
    %c0_64 = arith.constant 0 : index
    %c0_65 = arith.constant 0 : index
    %115 = vector.load %arg9[%c0_64, %c0_65] : memref<128x128xbf16, #tpu.memory_space<vmem>>, vector<128x128xbf16>
    %cst_66 = arith.constant dense<0.000000e+00> : vector<8x128xf32>
    %116 = tpu.matmul %114, %115, %cst_66 {dimension_numbers = #tpu.dot_dimension_numbers<[1], [0], [0], [1], [0, 0, 1, 1], [], []>} : vector<8x128xbf16>, vector<128x128xbf16>, vector<8x128xf32> -> vector<8x128xf32>
    %c0_67 = arith.constant 0 : index
    %c0_68 = arith.constant 0 : index
    %117 = vector.load %arg10[%c0_67, %c0_68] : memref<8x128xf32, #tpu.memory_space<vmem>>, vector<8x128xf32>
    %118 = arith.addf %116, %117 : vector<8x128xf32>
    %c0_69 = arith.constant 0 : index
    %c0_70 = arith.constant 0 : index
    %119 = vector.load %arg11[%c0_69, %c0_70] : memref<8x128xf32, #tpu.memory_space<vmem>>, vector<8x128xf32>
    tpu.vector_store %arg11[%c0_69, %c0_70], %118 {strides = array<i32>} : memref<8x128xf32, #tpu.memory_space<vmem>>, vector<8x128xf32>,
    return
  }
  func.func @transform_0(%arg0: i32) -> (i32, i32) {
    %c0_i32 = arith.constant 0 : i32
    %c0_i32_0 = arith.constant 0 : i32
    return %c0_i32, %arg0 : i32, i32
  }
  func.func @transform_1(%arg0: i32) -> (i32, i32) {
    %c0_i32 = arith.constant 0 : i32
    %c0_i32_0 = arith.constant 0 : i32
    %c0_i32_1 = arith.constant 0 : i32
    return %c0_i32, %c0_i32_0 : i32, i32
  }
  func.func @transform_2(%arg0: i32) -> (i32, i32) {
    %c0_i32 = arith.constant 0 : i32
    %c0_i32_0 = arith.constant 0 : i32
    %c0_i32_1 = arith.constant 0 : i32
    return %c0_i32, %c0_i32_0 : i32, i32
  }
  func.func @transform_3(%arg0: i32) -> (i32, i32, i32) {
    %c0_i32 = arith.constant 0 : i32
    %c0_i32_0 = arith.constant 0 : i32
    %c0_i32_1 = arith.constant 0 : i32
    %c0_i32_2 = arith.constant 0 : i32
    return %c0_i32, %c0_i32_0, %c0_i32_1 : i32, i32, i32
  }
  func.func @transform_4(%arg0: i32) -> (i32, i32, i32) {
    %c0_i32 = arith.constant 0 : i32
    %c0_i32_0 = arith.constant 0 : i32
    %c0_i32_1 = arith.constant 0 : i32
    %c0_i32_2 = arith.constant 0 : i32
    return %c0_i32, %c0_i32_0, %c0_i32_1 : i32, i32, i32
  }
  func.func @transform_5(%arg0: i32) -> (i32, i32, i32) {
    %c0_i32 = arith.constant 0 : i32
    %c0_i32_0 = arith.constant 0 : i32
    %c0_i32_1 = arith.constant 0 : i32
    %c0_i32_2 = arith.constant 0 : i32
    return %c0_i32, %c0_i32_0, %c0_i32_1 : i32, i32, i32
  }
  func.func @transform_6(%arg0: i32) -> (i32, i32, i32) {
    %c0_i32 = arith.constant 0 : i32
    %c0_i32_0 = arith.constant 0 : i32
    %c0_i32_1 = arith.constant 0 : i32
    %c0_i32_2 = arith.constant 0 : i32
    return %c0_i32, %c0_i32_0, %c0_i32_1 : i32, i32, i32
  }
  func.func @transform_7(%arg0: i32) -> (i32, i32) {
    %c0_i32 = arith.constant 0 : i32
    %c0_i32_0 = arith.constant 0 : i32
    %c0_i32_1 = arith.constant 0 : i32
    return %c0_i32, %c0_i32_0 : i32, i32
  }
  func.func @transform_8(%arg0: i32) -> (i32, i32) {
    %c0_i32 = arith.constant 0 : i32
    %c0_i32_0 = arith.constant 0 : i32
    %c0_i32_1 = arith.constant 0 : i32
    return %c0_i32, %c0_i32_0 : i32, i32
  }
  func.func @transform_9(%arg0: i32) -> (i32, i32) {
    %c0_i32 = arith.constant 0 : i32
    %c0_i32_0 = arith.constant 0 : i32
    %c0_i32_1 = arith.constant 0 : i32
    return %c0_i32, %c0_i32_0 : i32, i32
  }
  func.func @transform_10(%arg0: i32) -> (i32, i32) {
    %c0_i32 = arith.constant 0 : i32
    %c0_i32_0 = arith.constant 0 : i32
    return %c0_i32, %arg0 : i32, i32
  }
}

</mosaic_0001>

<llo_original>
// kernel: simlpe_forward.1
$region0: #{simlpe_forward.1}
  #allocation0 [shape = 'u32[]', space=smem, size = 0x4, offset = 0x4, fixed_abs, tag = 'smem constant byte address 0x4 - core index']
  #allocation1 [shape = 'u32[144,128]{1,0:T(1,128)}', space=vmem, size = 0x12000, scoped, tag = 'internal scratch']
  %s0 = inlined_call_operand.vmem [shape: bf16[8,128], index: 0, kind: input, shape index: {}]
  %s1 = inlined_call_operand.vmem [shape: bf16[128,128], index: 1, kind: input, shape index: {}]
  %s2 = inlined_call_operand.hbm [shape: f32[8,128], index: 2, kind: input, shape index: {}]
  %s3 = inlined_call_operand.hbm [shape: bf16[4,8,8], index: 3, kind: input, shape index: {}]
  %s4 = inlined_call_operand.hbm [shape: f32[4,8,128], index: 4, kind: input, shape index: {}]
  %s5 = inlined_call_operand.hbm [shape: f32[4,8,128], index: 5, kind: input, shape index: {}]
  %s6 = inlined_call_operand.hbm [shape: f32[4,8,128], index: 6, kind: input, shape index: {}]
  %s7 = inlined_call_operand.hbm [shape: bf16[128,128], index: 7, kind: input, shape index: {}]
  %s8 = inlined_call_operand.vmem [shape: bf16[128,128], index: 8, kind: input, shape index: {}]
  %s9 = inlined_call_operand.hbm [shape: f32[8,128], index: 9, kind: input, shape index: {}]
  %s10 = inlined_call_operand.vmem [shape: f32[8,128], index: 10, kind: output, shape index: {}]
  %s11 = sld [smem:[#allocation0]]
  $region78: #{simlpe_forward.1} parent=0
    _
  %s13 = ssub.s32 1, %s11
  %s14 = scalar_select 0, %s13, %s11
  $region1: #{simlpe_forward.1} parent=0
    #allocation2 [shape = 'u8[4096]{0}', space=vmem, size = 0x1000, scoped, tag = 'input window, operand 2, single buffered']
    #allocation3 [shape = 's32[1]{0}', space=sflag, size = 0x4, scoped, tag = 'scoped memory for simlpe_forward.1']
    #allocation4 [shape = 'u8[8192]{0}', space=vmem, size = 0x2000, scoped, tag = 'input window, operand 3, single buffered']
    #allocation5 [shape = 's32[1]{0}', space=sflag, size = 0x4, scoped, tag = 'scoped memory for simlpe_forward.1']
    #allocation6 [shape = 'u8[16384]{0}', space=vmem, size = 0x4000, scoped, tag = 'input window, operand 4, single buffered']
    #allocation7 [shape = 'u8[16384]{0}', space=vmem, size = 0x4000, scoped, tag = 'input window, operand 5, single buffered']
    #allocation8 [shape = 's32[1]{0}', space=sflag, size = 0x4, scoped, tag = 'scoped memory for simlpe_forward.1']
    #allocation9 [shape = 'u8[16384]{0}', space=vmem, size = 0x4000, scoped, tag = 'input window, operand 6, single buffered']
    #allocation10 [shape = 'u8[32768]{0}', space=vmem, size = 0x8000, scoped, tag = 'input window, operand 7, single buffered']
    #allocation11 [shape = 's32[1]{0}', space=sflag, size = 0x4, scoped, tag = 'scoped memory for simlpe_forward.1']
    #allocation12 [shape = 'u8[4096]{0}', space=vmem, size = 0x1000, scoped, tag = 'input window, operand 9, single buffered']
    %15 = vsyncpa [#allocation3], 0
    %16 = vsyncpa [#allocation5], 0
    %17 = vsyncpa [#allocation8], 0
    %18 = vsyncpa [#allocation11], 0
    // Predicated region
    $region2: #{simlpe_forward.1} parent=1 // pred_check
      _
    $region3: #{simlpe_forward.1} parent=1 // pred_check_branch
      %20 = sbr.rel (0) target = $region5
    $region4: #{simlpe_forward.1} parent=1 // pred_region
      _
    $region5: #{simlpe_forward.1} parent=1 // pred_fallthru
      _
    // Predicated region
    $region6: #{simlpe_forward.1} parent=1 // pred_check
      _
    $region7: #{simlpe_forward.1} parent=1 // pred_check_branch
      %22 = sbr.rel (0) target = $region9
    $region8: #{simlpe_forward.1} parent=1 // pred_region
      _
    $region9: #{simlpe_forward.1} parent=1 // pred_fallthru
      _
    // Predicated region
    $region10: #{simlpe_forward.1} parent=1 // pred_check
      _
    $region11: #{simlpe_forward.1} parent=1 // pred_check_branch
      %24 = sbr.rel (0) target = $region13
    $region12: #{simlpe_forward.1} parent=1 // pred_region
      %s26 = ssub.s32 128, 128
      %27 = vsyncadd [#allocation3], %s26
      %s29 = sshll.u32 [#allocation2], 4
      %s30 = int_to_ptr.vmem [resolvable:$true] %s29
      %32 = dma.hbm_to_vmem [thread:$0]  %s2, 128, %s30, [#allocation3]
    $region13: #{simlpe_forward.1} parent=1 // pred_fallthru
      _
    // Predicated region
    $region14: #{simlpe_forward.1} parent=1 // pred_check
      _
    $region15: #{simlpe_forward.1} parent=1 // pred_check_branch
      %34 = sbr.rel (0) target = $region17
    $region16: #{simlpe_forward.1} parent=1 // pred_region
      %s36 = ssub.s32 256, 256
      %37 = vsyncadd [#allocation5], %s36
      %s38 = sshll.u32 [#allocation4], 4
      %s39 = int_to_ptr.vmem [resolvable:$true] %s38
      %44 = dma.hbm_to_vmem [thread:$0]  %s3, 256, %s39, [#allocation5], 64, 64, 4
    $region17: #{simlpe_forward.1} parent=1 // pred_fallthru
      _
    // Predicated region
    $region18: #{simlpe_forward.1} parent=1 // pred_check
      _
    $region19: #{simlpe_forward.1} parent=1 // pred_check_branch
      %46 = sbr.rel (0) target = $region21
    $region20: #{simlpe_forward.1} parent=1 // pred_region
      %s48 = ssub.s32 512, 512
      %49 = vsyncadd [#allocation5], %s48
      %s50 = sshll.u32 [#allocation6], 4
      %s51 = int_to_ptr.vmem [resolvable:$true] %s50
      %56 = dma.hbm_to_vmem [thread:$0]  %s4, 512, %s51, [#allocation5], 128, 128, 8
    $region21: #{simlpe_forward.1} parent=1 // pred_fallthru
      _
    // Predicated region
    $region22: #{simlpe_forward.1} parent=1 // pred_check
      _
    $region23: #{simlpe_forward.1} parent=1 // pred_check_branch
      %58 = sbr.rel (0) target = $region25
    $region24: #{simlpe_forward.1} parent=1 // pred_region
      %s60 = ssub.s32 512, 512
      %61 = vsyncadd [#allocation8], %s60
      %s62 = sshll.u32 [#allocation7], 4
      %s63 = int_to_ptr.vmem [resolvable:$true] %s62
      %68 = dma.hbm_to_vmem [thread:$0]  %s5, 512, %s63, [#allocation8], 128, 128, 8
    $region25: #{simlpe_forward.1} parent=1 // pred_fallthru
      _
    // Predicated region
    $region26: #{simlpe_forward.1} parent=1 // pred_check
      _
    $region27: #{simlpe_forward.1} parent=1 // pred_check_branch
      %70 = sbr.rel (0) target = $region29
    $region28: #{simlpe_forward.1} parent=1 // pred_region
      %s72 = ssub.s32 512, 512
      %73 = vsyncadd [#allocation8], %s72
      %s74 = sshll.u32 [#allocation9], 4
      %s75 = int_to_ptr.vmem [resolvable:$true] %s74
      %80 = dma.hbm_to_vmem [thread:$0]  %s6, 512, %s75, [#allocation8], 128, 128, 8
    $region29: #{simlpe_forward.1} parent=1 // pred_fallthru
      _
    // Predicated region
    $region30: #{simlpe_forward.1} parent=1 // pred_check
      _
    $region31: #{simlpe_forward.1} parent=1 // pred_check_branch
      %82 = sbr.rel (0) target = $region33
    $region32: #{simlpe_forward.1} parent=1 // pred_region
      %s84 = ssub.s32 1024, 1024
      %85 = vsyncadd [#allocation11], %s84
      %s86 = sshll.u32 [#allocation10], 4
      %s87 = int_to_ptr.vmem [resolvable:$true] %s86
      %92 = dma.hbm_to_vmem [thread:$0]  %s7, 1024, %s87, [#allocation11], 64, 64, 4
    $region33: #{simlpe_forward.1} parent=1 // pred_fallthru
      _
    // Predicated region
    $region34: #{simlpe_forward.1} parent=1 // pred_check
      _
    $region35: #{simlpe_forward.1} parent=1 // pred_check_branch
      %94 = sbr.rel (0) target = $region37
    $region36: #{simlpe_forward.1} parent=1 // pred_region
      _
    $region37: #{simlpe_forward.1} parent=1 // pred_fallthru
      _
    // Predicated region
    $region38: #{simlpe_forward.1} parent=1 // pred_check
      _
    $region39: #{simlpe_forward.1} parent=1 // pred_check_branch
      %96 = sbr.rel (0) target = $region41
    $region40: #{simlpe_forward.1} parent=1 // pred_region
      %s98 = ssub.s32 128, 128
      %99 = vsyncadd [#allocation11], %s98
      %s101 = sshll.u32 [#allocation12], 4
      %s102 = int_to_ptr.vmem [resolvable:$true] %s101
      %104 = dma.hbm_to_vmem [thread:$0]  %s9, 128, %s102, [#allocation11]
    $region41: #{simlpe_forward.1} parent=1 // pred_fallthru
      _
    // Predicated region
    $region42: #{simlpe_forward.1} parent=1 // pred_check
      _
    $region43: #{simlpe_forward.1} parent=1 // pred_check_branch
      %106 = sbr.rel (0) target = $region45
    $region44: #{simlpe_forward.1} parent=1 // pred_region
      %107 = dma.done [#allocation3], 128
    $region45: #{simlpe_forward.1} parent=1 // pred_fallthru
      _
    // Predicated region
    $region46: #{simlpe_forward.1} parent=1 // pred_check
      _
    $region47: #{simlpe_forward.1} parent=1 // pred_check_branch
      %109 = sbr.rel (0) target = $region49
    $region48: #{simlpe_forward.1} parent=1 // pred_region
      %110 = dma.done [#allocation5], 256
    $region49: #{simlpe_forward.1} parent=1 // pred_fallthru
      _
    // Predicated region
    $region50: #{simlpe_forward.1} parent=1 // pred_check
      _
    $region51: #{simlpe_forward.1} parent=1 // pred_check_branch
      %112 = sbr.rel (0) target = $region53
    $region52: #{simlpe_forward.1} parent=1 // pred_region
      %113 = dma.done [#allocation5], 512
    $region53: #{simlpe_forward.1} parent=1 // pred_fallthru
      _
    // Predicated region
    $region54: #{simlpe_forward.1} parent=1 // pred_check
      _
    $region55: #{simlpe_forward.1} parent=1 // pred_check_branch
      %115 = sbr.rel (0) target = $region57
    $region56: #{simlpe_forward.1} parent=1 // pred_region
      %116 = dma.done [#allocation8], 512
    $region57: #{simlpe_forward.1} parent=1 // pred_fallthru
      _
    // Predicated region
    $region58: #{simlpe_forward.1} parent=1 // pred_check
      _
    $region59: #{simlpe_forward.1} parent=1 // pred_check_branch
      %118 = sbr.rel (0) target = $region61
    $region60: #{simlpe_forward.1} parent=1 // pred_region
      %119 = dma.done [#allocation8], 512
    $region61: #{simlpe_forward.1} parent=1 // pred_fallthru
      _
    // Predicated region
    $region62: #{simlpe_forward.1} parent=1 // pred_check
      _
    $region63: #{simlpe_forward.1} parent=1 // pred_check_branch
      %121 = sbr.rel (0) target = $region65
    $region64: #{simlpe_forward.1} parent=1 // pred_region
      %122 = dma.done [#allocation11], 1024
    $region65: #{simlpe_forward.1} parent=1 // pred_fallthru
      _
    // Predicated region
    $region66: #{simlpe_forward.1} parent=1 // pred_check
      _
    $region67: #{simlpe_forward.1} parent=1 // pred_check_branch
      %124 = sbr.rel (0) target = $region69
    $region68: #{simlpe_forward.1} parent=1 // pred_region
      %125 = dma.done [#allocation11], 128
    $region69: #{simlpe_forward.1} parent=1 // pred_fallthru
      _
    %v127 = vld [vmem:[#allocation10] sm:$0xf]
    %v128 = vld [vmem:[#allocation10 + $0x4] sm:$0xf]
    %v129 = vld [vmem:[#allocation10 + $0x8] sm:$0xf]
    %v130 = vld [vmem:[#allocation10 + $0xc] sm:$0xf]
    %v131 = vld [vmem:[#allocation10 + $0x10] sm:$0xf]
    %v132 = vld [vmem:[#allocation10 + $0x14] sm:$0xf]
    %v133 = vld [vmem:[#allocation10 + $0x18] sm:$0xf]
    %v134 = vld [vmem:[#allocation10 + $0x1c] sm:$0xf]
    %v135 = vld [vmem:[#allocation10 + $0x20] sm:$0xf]
    %v136 = vld [vmem:[#allocation10 + $0x24] sm:$0xf]
    %v137 = vld [vmem:[#allocation10 + $0x28] sm:$0xf]
    %v138 = vld [vmem:[#allocation10 + $0x2c] sm:$0xf]
    %v139 = vld [vmem:[#allocation10 + $0x30] sm:$0xf]
    %v140 = vld [vmem:[#allocation10 + $0x34] sm:$0xf]
    %v141 = vld [vmem:[#allocation10 + $0x38] sm:$0xf]
    %v142 = vld [vmem:[#allocation10 + $0x3c] sm:$0xf]
    %v143 = vld [vmem:[%s0] sm:$0xf]
    %v144 = vld [vmem:[%s1] sm:$0xf]
    %v145 = vld [vmem:[%s1 + $0x4] sm:$0xf]
    %v146 = vld [vmem:[%s1 + $0x8] sm:$0xf]
    %v147 = vld [vmem:[%s1 + $0xc] sm:$0xf]
    %v148 = vld [vmem:[%s1 + $0x10] sm:$0xf]
    %v149 = vld [vmem:[%s1 + $0x14] sm:$0xf]
    %v150 = vld [vmem:[%s1 + $0x18] sm:$0xf]
    %v151 = vld [vmem:[%s1 + $0x1c] sm:$0xf]
    %v152 = vld [vmem:[%s1 + $0x20] sm:$0xf]
    %v153 = vld [vmem:[%s1 + $0x24] sm:$0xf]
    %v154 = vld [vmem:[%s1 + $0x28] sm:$0xf]
    %v155 = vld [vmem:[%s1 + $0x2c] sm:$0xf]
    %v156 = vld [vmem:[%s1 + $0x30] sm:$0xf]
    %v157 = vld [vmem:[%s1 + $0x34] sm:$0xf]
    %v158 = vld [vmem:[%s1 + $0x38] sm:$0xf]
    %v159 = vld [vmem:[%s1 + $0x3c] sm:$0xf]
    %v160 = vld [vmem:[#allocation2] sm:$0xff]
    %v177 = vunpack.c.l.b16 %v144
    %v178 = vunpack.c.l.b16 %v145
    %v179 = vunpack.c.l.b16 %v146
    %v180 = vunpack.c.l.b16 %v147
    %v181 = vunpack.c.l.b16 %v148
    %v182 = vunpack.c.l.b16 %v149
    %v183 = vunpack.c.l.b16 %v150
    %v184 = vunpack.c.l.b16 %v151
    %v185 = vunpack.c.l.b16 %v152
    %v186 = vunpack.c.l.b16 %v153
    %v187 = vunpack.c.l.b16 %v154
    %v188 = vunpack.c.l.b16 %v155
    %v189 = vunpack.c.l.b16 %v156
    %v190 = vunpack.c.l.b16 %v157
    %v191 = vunpack.c.l.b16 %v158
    %v192 = vunpack.c.l.b16 %v159
    %v193 = vpack.c.b16 %v178, %v177
    %v194 = vpack.c.b16 %v180, %v179
    %v195 = vpack.c.b16 %v182, %v181
    %v196 = vpack.c.b16 %v184, %v183
    %v197 = vpack.c.b16 %v186, %v185
    %v198 = vpack.c.b16 %v188, %v187
    %v199 = vpack.c.b16 %v190, %v189
    %v200 = vpack.c.b16 %v192, %v191
    %209 = vmatprep.subr.bf16.mxu0 0
    %210 = vmatpush1.bf16.msra.mxu0 %v193
    %211 = vmatprep.subr.bf16.mxu0 0
    %212 = vmatpush1.bf16.msra.mxu0 %v194
    %213 = vmatprep.subr.bf16.mxu0 0
    %214 = vmatpush1.bf16.msra.mxu0 %v195
    %215 = vmatprep.subr.bf16.mxu0 0
    %216 = vmatpush1.bf16.msra.mxu0 %v196
    %217 = vmatprep.subr.bf16.mxu0 0
    %218 = vmatpush1.bf16.msra.mxu0 %v197
    %219 = vmatprep.subr.bf16.mxu0 0
    %220 = vmatpush1.bf16.msra.mxu0 %v198
    %221 = vmatprep.subr.bf16.mxu0 0
    %222 = vmatpush1.bf16.msra.mxu0 %v199
    %223 = vmatprep.subr.bf16.mxu0 0
    %224 = vmatpush1.bf16.msra.mxu0 %v200
    %225 = vmatprep.subr.bf16.mxu0 0
    %226 = vmatpush1.bf16.msra.mxu0 0
    %227 = vmatprep.subr.bf16.mxu0 0
    %228 = vmatpush1.bf16.msra.mxu0 0
    %229 = vmatprep.subr.bf16.mxu0 0
    %230 = vmatpush1.bf16.msra.mxu0 0
    %231 = vmatprep.subr.bf16.mxu0 0
    %232 = vmatpush1.bf16.msra.mxu0 0
    %233 = vmatprep.subr.bf16.mxu0 0
    %234 = vmatpush1.bf16.msra.mxu0 0
    %235 = vmatprep.subr.bf16.mxu0 0
    %236 = vmatpush1.bf16.msra.mxu0 0
    %237 = vmatprep.subr.bf16.mxu0 0
    %238 = vmatpush1.bf16.msra.mxu0 0
    %239 = vmatprep.subr.bf16.mxu0 0
    %240 = vmatpush1.bf16.msra.mxu0 0
    %241 = vmatprep.mubr.bf16.mxu0 0
    %242 = vmatmul.mubr.bf16.gmra.mrb[0].mxu0 %v143
    %v243 = vpop.f32.mrb[0].mxu0
    %v244 = vadd.f32 %v160, %v243
    %v245 = vpop.f32.mrb[0].mxu0
    %v246 = vpop.f32.mrb[0].mxu0
    %v247 = vpop.f32.mrb[0].mxu0
    %248 = vdwg.mxu0
    %v249 = vld [vmem:[#allocation4] sm:$0xf]
    %v250 = vpack.c.bf16 %v244, %v244
    %v251 = vld [vmem:[#allocation6] sm:$0xff]
    %vm252 = vcmask 64512
    %v254 = vsel %vm252, %v249, 0
    %vm256 = vcmask 1043456
    %v258 = vsel %vm256, %v250, 0
    %260 = vmatprep.subr.bf16.mxu0 0
    %261 = vmatpush1.bf16.msra.mxu0 %v258
    %262 = vmatprep.subr.bf16.mxu0 0
    %263 = vmatpush1.bf16.msra.mxu0 0
    %264 = vmatprep.subr.bf16.mxu0 0
    %265 = vmatpush1.bf16.msra.mxu0 0
    %266 = vmatprep.subr.bf16.mxu0 0
    %267 = vmatpush1.bf16.msra.mxu0 0
    %268 = vmatprep.subr.bf16.mxu0 0
    %269 = vmatpush1.bf16.msra.mxu0 0
    %270 = vmatprep.subr.bf16.mxu0 0
    %271 = vmatpush1.bf16.msra.mxu0 0
    %272 = vmatprep.subr.bf16.mxu0 0
    %273 = vmatpush1.bf16.msra.mxu0 0
    %274 = vmatprep.subr.bf16.mxu0 0
    %275 = vmatpush1.bf16.msra.mxu0 0
    %276 = vmatprep.subr.bf16.mxu0 0
    %277 = vmatpush1.bf16.msra.mxu0 0
    %278 = vmatprep.subr.bf16.mxu0 0
    %279 = vmatpush1.bf16.msra.mxu0 0
    %280 = vmatprep.subr.bf16.mxu0 0
    %281 = vmatpush1.bf16.msra.mxu0 0
    %282 = vmatprep.subr.bf16.mxu0 0
    %283 = vmatpush1.bf16.msra.mxu0 0
    %284 = vmatprep.subr.bf16.mxu0 0
    %285 = vmatpush1.bf16.msra.mxu0 0
    %286 = vmatprep.subr.bf16.mxu0 0
    %287 = vmatpush1.bf16.msra.mxu0 0
    %288 = vmatprep.subr.bf16.mxu0 0
    %289 = vmatpush1.bf16.msra.mxu0 0
    %290 = vmatprep.subr.bf16.mxu0 0
    %291 = vmatpush1.bf16.msra.mxu0 0
    %292 = vmatprep.mubr.bf16.mxu0 0
    %293 = vmatmul.mubr.bf16.gmra.mrb[0].mxu0 %v254
    %v294 = vpop.f32.mrb[0].mxu0
    %v295 = vadd.f32 %v251, %v294
    %v296 = vpop.f32.mrb[0].mxu0
    %v297 = vpop.f32.mrb[0].mxu0
    %v298 = vpop.f32.mrb[0].mxu0
    %299 = vdwg.mxu0
    %v300 = vmul.f32 %v295, %v295
    %v301 = vpack.c.bf16 %v300, %v295
    %v318 = vunpack.c.l.b16 %v127
    %v319 = vunpack.c.l.b16 %v128
    %v320 = vunpack.c.l.b16 %v129
    %v321 = vunpack.c.l.b16 %v130
    %v322 = vunpack.c.l.b16 %v131
    %v323 = vunpack.c.l.b16 %v132
    %v324 = vunpack.c.l.b16 %v133
    %v325 = vunpack.c.l.b16 %v134
    %v326 = vunpack.c.l.b16 %v135
    %v327 = vunpack.c.l.b16 %v136
    %v328 = vunpack.c.l.b16 %v137
    %v329 = vunpack.c.l.b16 %v138
    %v330 = vunpack.c.l.b16 %v139
    %v331 = vunpack.c.l.b16 %v140
    %v332 = vunpack.c.l.b16 %v141
    %v333 = vunpack.c.l.b16 %v142
    %v334 = vpack.c.b16 %v319, %v318
    %v335 = vpack.c.b16 %v321, %v320
    %v336 = vpack.c.b16 %v323, %v322
    %v337 = vpack.c.b16 %v325, %v324
    %v338 = vpack.c.b16 %v327, %v326
    %v339 = vpack.c.b16 %v329, %v328
    %v340 = vpack.c.b16 %v331, %v330
    %v341 = vpack.c.b16 %v333, %v332
    %350 = vmatprep.subr.bf16.mxu0 0
    %351 = vmatpush1.bf16.msra.mxu0 %v334
    %352 = vmatprep.subr.bf16.mxu0 0
    %353 = vmatpush1.bf16.msra.mxu0 %v335
    %354 = vmatprep.subr.bf16.mxu0 0
    %355 = vmatpush1.bf16.msra.mxu0 %v336
    %356 = vmatprep.subr.bf16.mxu0 0
    %357 = vmatpush1.bf16.msra.mxu0 %v337
    %358 = vmatprep.subr.bf16.mxu0 0
    %359 = vmatpush1.bf16.msra.mxu0 %v338
    %360 = vmatprep.subr.bf16.mxu0 0
    %361 = vmatpush1.bf16.msra.mxu0 %v339
    %362 = vmatprep.subr.bf16.mxu0 0
    %363 = vmatpush1.bf16.msra.mxu0 %v340
    %364 = vmatprep.subr.bf16.mxu0 0
    %365 = vmatpush1.bf16.msra.mxu0 %v341
    %366 = vmatprep.subr.bf16.mxu0 0
    %367 = vmatpush1.bf16.msra.mxu0 0
    %368 = vmatprep.subr.bf16.mxu0 0
    %369 = vmatpush1.bf16.msra.mxu0 0
    %370 = vmatprep.subr.bf16.mxu0 0
    %371 = vmatpush1.bf16.msra.mxu0 0
    %372 = vmatprep.subr.bf16.mxu0 0
    %373 = vmatpush1.bf16.msra.mxu0 0
    %374 = vmatprep.subr.bf16.mxu0 0
    %375 = vmatpush1.bf16.msra.mxu0 0
    %376 = vmatprep.subr.bf16.mxu0 0
    %377 = vmatpush1.bf16.msra.mxu0 0
    %378 = vmatprep.subr.bf16.mxu0 0
    %379 = vmatpush1.bf16.msra.mxu0 0
    %380 = vmatprep.subr.bf16.mxu0 0
    %381 = vmatpush1.bf16.msra.mxu0 0
    %382 = vmatprep.mubr.bf16.mxu0 0
    %383 = vmatmul.mubr.bf16.gmra.mrb[0].mxu0 %v301
    %v384 = vpop.f32.mrb[0].mxu0
    %v385 = vadd.f32 0.0, %v384
    %v386 = vpop.f32.mrb[0].mxu0
    %v387 = vpop.f32.mrb[0].mxu0
    %v388 = vadd.f32 0.0, %v387
    %v389 = vpop.f32.mrb[0].mxu0
    %390 = vdwg.mxu0
    %v391 = vmul.f32 %v385, %v385
    %v392 = vsub.f32 %v388, %v391
    %v393 = vsub.f32 %v295, %v385
    %v394 = vadd.f32 %v392, 1e-05
    %v395 = vrsqrt.pop %v394
    %v396 = vmul.f32 %v393, %v395
    %v397 = vld [vmem:[#allocation7] sm:$0xff]
    %v398 = vmul.f32 %v396, %v397
    %v399 = vadd.f32 %v244, %v398
    %v400 = vld [vmem:[#allocation9] sm:$0xff]
    %v401 = vadd.f32 %v399, %v400
    %s402 = scalar_lea.vmem [#allocation4], 4
    %v403 = vld [vmem:[%s402] sm:$0xf]
    %v404 = vpack.c.bf16 %v401, %v401
    %s405 = scalar_lea.vmem [#allocation6], 8
    %v406 = vld [vmem:[%s405] sm:$0xff]
    %v408 = vsel %vm252, %v403, 0
    %v411 = vsel %vm256, %v404, 0
    %413 = vmatprep.subr.bf16.mxu0 0
    %414 = vmatpush1.bf16.msra.mxu0 %v411
    %415 = vmatprep.subr.bf16.mxu0 0
    %416 = vmatpush1.bf16.msra.mxu0 0
    %417 = vmatprep.subr.bf16.mxu0 0
    %418 = vmatpush1.bf16.msra.mxu0 0
    %419 = vmatprep.subr.bf16.mxu0 0
    %420 = vmatpush1.bf16.msra.mxu0 0
    %421 = vmatprep.subr.bf16.mxu0 0
    %422 = vmatpush1.bf16.msra.mxu0 0
    %423 = vmatprep.subr.bf16.mxu0 0
    %424 = vmatpush1.bf16.msra.mxu0 0
    %425 = vmatprep.subr.bf16.mxu0 0
    %426 = vmatpush1.bf16.msra.mxu0 0
    %427 = vmatprep.subr.bf16.mxu0 0
    %428 = vmatpush1.bf16.msra.mxu0 0
    %429 = vmatprep.subr.bf16.mxu0 0
    %430 = vmatpush1.bf16.msra.mxu0 0
    %431 = vmatprep.subr.bf16.mxu0 0
    %432 = vmatpush1.bf16.msra.mxu0 0
    %433 = vmatprep.subr.bf16.mxu0 0
    %434 = vmatpush1.bf16.msra.mxu0 0
    %435 = vmatprep.subr.bf16.mxu0 0
    %436 = vmatpush1.bf16.msra.mxu0 0
    %437 = vmatprep.subr.bf16.mxu0 0
    %438 = vmatpush1.bf16.msra.mxu0 0
    %439 = vmatprep.subr.bf16.mxu0 0
    %440 = vmatpush1.bf16.msra.mxu0 0
    %441 = vmatprep.subr.bf16.mxu0 0
    %442 = vmatpush1.bf16.msra.mxu0 0
    %443 = vmatprep.subr.bf16.mxu0 0
    %444 = vmatpush1.bf16.msra.mxu0 0
    %445 = vmatprep.mubr.bf16.mxu0 0
    %446 = vmatmul.mubr.bf16.gmra.mrb[0].mxu0 %v408
    %v447 = vpop.f32.mrb[0].mxu0
    %v448 = vadd.f32 %v406, %v447
    %v449 = vpop.f32.mrb[0].mxu0
    %v450 = vpop.f32.mrb[0].mxu0
    %v451 = vpop.f32.mrb[0].mxu0
    %452 = vdwg.mxu0
    %v453 = vmul.f32 %v448, %v448
    %v454 = vpack.c.bf16 %v453, %v448
    %455 = vmatprep.subr.bf16.mxu0 0
    %456 = vmatpush1.bf16.msra.mxu0 %v334
    %457 = vmatprep.subr.bf16.mxu0 0
    %458 = vmatpush1.bf16.msra.mxu0 %v335
    %459 = vmatprep.subr.bf16.mxu0 0
    %460 = vmatpush1.bf16.msra.mxu0 %v336
    %461 = vmatprep.subr.bf16.mxu0 0
    %462 = vmatpush1.bf16.msra.mxu0 %v337
    %463 = vmatprep.subr.bf16.mxu0 0
    %464 = vmatpush1.bf16.msra.mxu0 %v338
    %465 = vmatprep.subr.bf16.mxu0 0
    %466 = vmatpush1.bf16.msra.mxu0 %v339
    %467 = vmatprep.subr.bf16.mxu0 0
    %468 = vmatpush1.bf16.msra.mxu0 %v340
    %469 = vmatprep.subr.bf16.mxu0 0
    %470 = vmatpush1.bf16.msra.mxu0 %v341
    %471 = vmatprep.subr.bf16.mxu0 0
    %472 = vmatpush1.bf16.msra.mxu0 0
    %473 = vmatprep.subr.bf16.mxu0 0
    %474 = vmatpush1.bf16.msra.mxu0 0
    %475 = vmatprep.subr.bf16.mxu0 0
    %476 = vmatpush1.bf16.msra.mxu0 0
    %477 = vmatprep.subr.bf16.mxu0 0
    %478 = vmatpush1.bf16.msra.mxu0 0
    %479 = vmatprep.subr.bf16.mxu0 0
    %480 = vmatpush1.bf16.msra.mxu0 0
    %481 = vmatprep.subr.bf16.mxu0 0
    %482 = vmatpush1.bf16.msra.mxu0 0
    %483 = vmatprep.subr.bf16.mxu0 0
    %484 = vmatpush1.bf16.msra.mxu0 0
    %485 = vmatprep.subr.bf16.mxu0 0
    %486 = vmatpush1.bf16.msra.mxu0 0
    %487 = vmatprep.mubr.bf16.mxu0 0
    %488 = vmatmul.mubr.bf16.gmra.mrb[0].mxu0 %v454
    %v489 = vpop.f32.mrb[0].mxu0
    %v490 = vadd.f32 0.0, %v489
    %v491 = vpop.f32.mrb[0].mxu0
    %v492 = vpop.f32.mrb[0].mxu0
    %v493 = vadd.f32 0.0, %v492
    %v494 = vpop.f32.mrb[0].mxu0
    %495 = vdwg.mxu0
    %v496 = vmul.f32 %v490, %v490
    %v497 = vsub.f32 %v493, %v496
    %v498 = vsub.f32 %v448, %v490
    %v499 = vadd.f32 %v497, 1e-05
    %v500 = vrsqrt.pop %v499
    %v501 = vmul.f32 %v498, %v500
    %s502 = scalar_lea.vmem [#allocation7], 8
    %v503 = vld [vmem:[%s502] sm:$0xff]
    %v504 = vmul.f32 %v501, %v503
    %v505 = vadd.f32 %v401, %v504
    %s506 = scalar_lea.vmem [#allocation9], 8
    %v507 = vld [vmem:[%s506] sm:$0xff]
    %v508 = vadd.f32 %v505, %v507
    %s509 = scalar_lea.vmem [#allocation4], 8
    %v510 = vld [vmem:[%s509] sm:$0xf]
    %v511 = vpack.c.bf16 %v508, %v508
    %s512 = scalar_lea.vmem [#allocation6], 16
    %v513 = vld [vmem:[%s512] sm:$0xff]
    %v515 = vsel %vm252, %v510, 0
    %v518 = vsel %vm256, %v511, 0
    %520 = vmatprep.subr.bf16.mxu0 0
    %521 = vmatpush1.bf16.msra.mxu0 %v518
    %522 = vmatprep.subr.bf16.mxu0 0
    %523 = vmatpush1.bf16.msra.mxu0 0
    %524 = vmatprep.subr.bf16.mxu0 0
    %525 = vmatpush1.bf16.msra.mxu0 0
    %526 = vmatprep.subr.bf16.mxu0 0
    %527 = vmatpush1.bf16.msra.mxu0 0
    %528 = vmatprep.subr.bf16.mxu0 0
    %529 = vmatpush1.bf16.msra.mxu0 0
    %530 = vmatprep.subr.bf16.mxu0 0
    %531 = vmatpush1.bf16.msra.mxu0 0
    %532 = vmatprep.subr.bf16.mxu0 0
    %533 = vmatpush1.bf16.msra.mxu0 0
    %534 = vmatprep.subr.bf16.mxu0 0
    %535 = vmatpush1.bf16.msra.mxu0 0
    %536 = vmatprep.subr.bf16.mxu0 0
    %537 = vmatpush1.bf16.msra.mxu0 0
    %538 = vmatprep.subr.bf16.mxu0 0
    %539 = vmatpush1.bf16.msra.mxu0 0
    %540 = vmatprep.subr.bf16.mxu0 0
    %541 = vmatpush1.bf16.msra.mxu0 0
    %542 = vmatprep.subr.bf16.mxu0 0
    %543 = vmatpush1.bf16.msra.mxu0 0
    %544 = vmatprep.subr.bf16.mxu0 0
    %545 = vmatpush1.bf16.msra.mxu0 0
    %546 = vmatprep.subr.bf16.mxu0 0
    %547 = vmatpush1.bf16.msra.mxu0 0
    %548 = vmatprep.subr.bf16.mxu0 0
    %549 = vmatpush1.bf16.msra.mxu0 0
    %550 = vmatprep.subr.bf16.mxu0 0
    %551 = vmatpush1.bf16.msra.mxu0 0
    %552 = vmatprep.mubr.bf16.mxu0 0
    %553 = vmatmul.mubr.bf16.gmra.mrb[0].mxu0 %v515
    %v554 = vpop.f32.mrb[0].mxu0
    %v555 = vadd.f32 %v513, %v554
    %v556 = vpop.f32.mrb[0].mxu0
    %v557 = vpop.f32.mrb[0].mxu0
    %v558 = vpop.f32.mrb[0].mxu0
    %559 = vdwg.mxu0
    %v560 = vmul.f32 %v555, %v555
    %v561 = vpack.c.bf16 %v560, %v555
    %562 = vmatprep.subr.bf16.mxu0 0
    %563 = vmatpush1.bf16.msra.mxu0 %v334
    %564 = vmatprep.subr.bf16.mxu0 0
    %565 = vmatpush1.bf16.msra.mxu0 %v335
    %566 = vmatprep.subr.bf16.mxu0 0
    %567 = vmatpush1.bf16.msra.mxu0 %v336
    %568 = vmatprep.subr.bf16.mxu0 0
    %569 = vmatpush1.bf16.msra.mxu0 %v337
    %570 = vmatprep.subr.bf16.mxu0 0
    %571 = vmatpush1.bf16.msra.mxu0 %v338
    %572 = vmatprep.subr.bf16.mxu0 0
    %573 = vmatpush1.bf16.msra.mxu0 %v339
    %574 = vmatprep.subr.bf16.mxu0 0
    %575 = vmatpush1.bf16.msra.mxu0 %v340
    %576 = vmatprep.subr.bf16.mxu0 0
    %577 = vmatpush1.bf16.msra.mxu0 %v341
    %578 = vmatprep.subr.bf16.mxu0 0
    %579 = vmatpush1.bf16.msra.mxu0 0
    %580 = vmatprep.subr.bf16.mxu0 0
    %581 = vmatpush1.bf16.msra.mxu0 0
    %582 = vmatprep.subr.bf16.mxu0 0
    %583 = vmatpush1.bf16.msra.mxu0 0
    %584 = vmatprep.subr.bf16.mxu0 0
    %585 = vmatpush1.bf16.msra.mxu0 0
    %586 = vmatprep.subr.bf16.mxu0 0
    %587 = vmatpush1.bf16.msra.mxu0 0
    %588 = vmatprep.subr.bf16.mxu0 0
    %589 = vmatpush1.bf16.msra.mxu0 0
    %590 = vmatprep.subr.bf16.mxu0 0
    %591 = vmatpush1.bf16.msra.mxu0 0
    %592 = vmatprep.subr.bf16.mxu0 0
    %593 = vmatpush1.bf16.msra.mxu0 0
    %594 = vmatprep.mubr.bf16.mxu0 0
    %595 = vmatmul.mubr.bf16.gmra.mrb[0].mxu0 %v561
    %v596 = vpop.f32.mrb[0].mxu0
    %v597 = vadd.f32 0.0, %v596
    %v598 = vpop.f32.mrb[0].mxu0
    %v599 = vpop.f32.mrb[0].mxu0
    %v600 = vadd.f32 0.0, %v599
    %v601 = vpop.f32.mrb[0].mxu0
    %602 = vdwg.mxu0
    %v603 = vmul.f32 %v597, %v597
    %v604 = vsub.f32 %v600, %v603
    %v605 = vsub.f32 %v555, %v597
    %v606 = vadd.f32 %v604, 1e-05
    %v607 = vrsqrt.pop %v606
    %v608 = vmul.f32 %v605, %v607
    %s609 = scalar_lea.vmem [#allocation7], 16
    %v610 = vld [vmem:[%s609] sm:$0xff]
    %v611 = vmul.f32 %v608, %v610
    %v612 = vadd.f32 %v508, %v611
    %s613 = scalar_lea.vmem [#allocation9], 16
    %v614 = vld [vmem:[%s613] sm:$0xff]
    %v615 = vadd.f32 %v612, %v614
    %s616 = scalar_lea.vmem [#allocation4], 12
    %v617 = vld [vmem:[%s616] sm:$0xf]
    %v618 = vpack.c.bf16 %v615, %v615
    %s619 = scalar_lea.vmem [#allocation6], 24
    %v620 = vld [vmem:[%s619] sm:$0xff]
    %v622 = vsel %vm252, %v617, 0
    %v625 = vsel %vm256, %v618, 0
    %627 = vmatprep.subr.bf16.mxu0 0
    %628 = vmatpush1.bf16.msra.mxu0 %v625
    %629 = vmatprep.subr.bf16.mxu0 0
    %630 = vmatpush1.bf16.msra.mxu0 0
    %631 = vmatprep.subr.bf16.mxu0 0
    %632 = vmatpush1.bf16.msra.mxu0 0
    %633 = vmatprep.subr.bf16.mxu0 0
    %634 = vmatpush1.bf16.msra.mxu0 0
    %635 = vmatprep.subr.bf16.mxu0 0
    %636 = vmatpush1.bf16.msra.mxu0 0
    %637 = vmatprep.subr.bf16.mxu0 0
    %638 = vmatpush1.bf16.msra.mxu0 0
    %639 = vmatprep.subr.bf16.mxu0 0
    %640 = vmatpush1.bf16.msra.mxu0 0
    %641 = vmatprep.subr.bf16.mxu0 0
    %642 = vmatpush1.bf16.msra.mxu0 0
    %643 = vmatprep.subr.bf16.mxu0 0
    %644 = vmatpush1.bf16.msra.mxu0 0
    %645 = vmatprep.subr.bf16.mxu0 0
    %646 = vmatpush1.bf16.msra.mxu0 0
    %647 = vmatprep.subr.bf16.mxu0 0
    %648 = vmatpush1.bf16.msra.mxu0 0
    %649 = vmatprep.subr.bf16.mxu0 0
    %650 = vmatpush1.bf16.msra.mxu0 0
    %651 = vmatprep.subr.bf16.mxu0 0
    %652 = vmatpush1.bf16.msra.mxu0 0
    %653 = vmatprep.subr.bf16.mxu0 0
    %654 = vmatpush1.bf16.msra.mxu0 0
    %655 = vmatprep.subr.bf16.mxu0 0
    %656 = vmatpush1.bf16.msra.mxu0 0
    %657 = vmatprep.subr.bf16.mxu0 0
    %658 = vmatpush1.bf16.msra.mxu0 0
    %659 = vmatprep.mubr.bf16.mxu0 0
    %660 = vmatmul.mubr.bf16.gmra.mrb[0].mxu0 %v622
    %v661 = vpop.f32.mrb[0].mxu0
    %v662 = vadd.f32 %v620, %v661
    %v663 = vpop.f32.mrb[0].mxu0
    %v664 = vpop.f32.mrb[0].mxu0
    %v665 = vpop.f32.mrb[0].mxu0
    %666 = vdwg.mxu0
    %v667 = vmul.f32 %v662, %v662
    %v668 = vpack.c.bf16 %v667, %v662
    %669 = vmatprep.subr.bf16.mxu0 0
    %670 = vmatpush1.bf16.msra.mxu0 %v334
    %671 = vmatprep.subr.bf16.mxu0 0
    %672 = vmatpush1.bf16.msra.mxu0 %v335
    %673 = vmatprep.subr.bf16.mxu0 0
    %674 = vmatpush1.bf16.msra.mxu0 %v336
    %675 = vmatprep.subr.bf16.mxu0 0
    %676 = vmatpush1.bf16.msra.mxu0 %v337
    %677 = vmatprep.subr.bf16.mxu0 0
    %678 = vmatpush1.bf16.msra.mxu0 %v338
    %679 = vmatprep.subr.bf16.mxu0 0
    %680 = vmatpush1.bf16.msra.mxu0 %v339
    %681 = vmatprep.subr.bf16.mxu0 0
    %682 = vmatpush1.bf16.msra.mxu0 %v340
    %683 = vmatprep.subr.bf16.mxu0 0
    %684 = vmatpush1.bf16.msra.mxu0 %v341
    %685 = vmatprep.subr.bf16.mxu0 0
    %686 = vmatpush1.bf16.msra.mxu0 0
    %687 = vmatprep.subr.bf16.mxu0 0
    %688 = vmatpush1.bf16.msra.mxu0 0
    %689 = vmatprep.subr.bf16.mxu0 0
    %690 = vmatpush1.bf16.msra.mxu0 0
    %691 = vmatprep.subr.bf16.mxu0 0
    %692 = vmatpush1.bf16.msra.mxu0 0
    %693 = vmatprep.subr.bf16.mxu0 0
    %694 = vmatpush1.bf16.msra.mxu0 0
    %695 = vmatprep.subr.bf16.mxu0 0
    %696 = vmatpush1.bf16.msra.mxu0 0
    %697 = vmatprep.subr.bf16.mxu0 0
    %698 = vmatpush1.bf16.msra.mxu0 0
    %699 = vmatprep.subr.bf16.mxu0 0
    %700 = vmatpush1.bf16.msra.mxu0 0
    %701 = vmatprep.mubr.bf16.mxu0 0
    %702 = vmatmul.mubr.bf16.gmra.mrb[0].mxu0 %v668
    %v703 = vpop.f32.mrb[0].mxu0
    %v704 = vadd.f32 0.0, %v703
    %v705 = vpop.f32.mrb[0].mxu0
    %v706 = vpop.f32.mrb[0].mxu0
    %v707 = vadd.f32 0.0, %v706
    %v708 = vpop.f32.mrb[0].mxu0
    %709 = vdwg.mxu0
    %v710 = vmul.f32 %v704, %v704
    %v711 = vsub.f32 %v707, %v710
    %v712 = vsub.f32 %v662, %v704
    %v713 = vadd.f32 %v711, 1e-05
    %v714 = vrsqrt.pop %v713
    %v715 = vmul.f32 %v712, %v714
    %s716 = scalar_lea.vmem [#allocation7], 24
    %v717 = vld [vmem:[%s716] sm:$0xff]
    %v718 = vmul.f32 %v715, %v717
    %v719 = vadd.f32 %v615, %v718
    %s720 = scalar_lea.vmem [#allocation9], 24
    %v721 = vld [vmem:[%s720] sm:$0xff]
    %v722 = vadd.f32 %v719, %v721
    %v723 = vpack.c.bf16 %v722, %v722
    %v724 = vld [vmem:[%s8] sm:$0xf]
    %v725 = vld [vmem:[%s8 + $0x4] sm:$0xf]
    %v726 = vld [vmem:[%s8 + $0x8] sm:$0xf]
    %v727 = vld [vmem:[%s8 + $0xc] sm:$0xf]
    %v728 = vld [vmem:[%s8 + $0x10] sm:$0xf]
    %v729 = vld [vmem:[%s8 + $0x14] sm:$0xf]
    %v730 = vld [vmem:[%s8 + $0x18] sm:$0xf]
    %v731 = vld [vmem:[%s8 + $0x1c] sm:$0xf]
    %v732 = vld [vmem:[%s8 + $0x20] sm:$0xf]
    %v733 = vld [vmem:[%s8 + $0x24] sm:$0xf]
    %v734 = vld [vmem:[%s8 + $0x28] sm:$0xf]
    %v735 = vld [vmem:[%s8 + $0x2c] sm:$0xf]
    %v736 = vld [vmem:[%s8 + $0x30] sm:$0xf]
    %v737 = vld [vmem:[%s8 + $0x34] sm:$0xf]
    %v738 = vld [vmem:[%s8 + $0x38] sm:$0xf]
    %v739 = vld [vmem:[%s8 + $0x3c] sm:$0xf]
    %v740 = vld [vmem:[#allocation12] sm:$0xff]
    %v757 = vunpack.c.l.b16 %v724
    %v758 = vunpack.c.l.b16 %v725
    %v759 = vunpack.c.l.b16 %v726
    %v760 = vunpack.c.l.b16 %v727
    %v761 = vunpack.c.l.b16 %v728
    %v762 = vunpack.c.l.b16 %v729
    %v763 = vunpack.c.l.b16 %v730
    %v764 = vunpack.c.l.b16 %v731
    %v765 = vunpack.c.l.b16 %v732
    %v766 = vunpack.c.l.b16 %v733
    %v767 = vunpack.c.l.b16 %v734
    %v768 = vunpack.c.l.b16 %v735
    %v769 = vunpack.c.l.b16 %v736
    %v770 = vunpack.c.l.b16 %v737
    %v771 = vunpack.c.l.b16 %v738
    %v772 = vunpack.c.l.b16 %v739
    %v773 = vpack.c.b16 %v758, %v757
    %v774 = vpack.c.b16 %v760, %v759
    %v775 = vpack.c.b16 %v762, %v761
    %v776 = vpack.c.b16 %v764, %v763
    %v777 = vpack.c.b16 %v766, %v765
    %v778 = vpack.c.b16 %v768, %v767
    %v779 = vpack.c.b16 %v770, %v769
    %v780 = vpack.c.b16 %v772, %v771
    %789 = vmatprep.subr.bf16.mxu0 0
    %790 = vmatpush1.bf16.msra.mxu0 %v773
    %791 = vmatprep.subr.bf16.mxu0 0
    %792 = vmatpush1.bf16.msra.mxu0 %v774
    %793 = vmatprep.subr.bf16.mxu0 0
    %794 = vmatpush1.bf16.msra.mxu0 %v775
    %795 = vmatprep.subr.bf16.mxu0 0
    %796 = vmatpush1.bf16.msra.mxu0 %v776
    %797 = vmatprep.subr.bf16.mxu0 0
    %798 = vmatpush1.bf16.msra.mxu0 %v777
    %799 = vmatprep.subr.bf16.mxu0 0
    %800 = vmatpush1.bf16.msra.mxu0 %v778
    %801 = vmatprep.subr.bf16.mxu0 0
    %802 = vmatpush1.bf16.msra.mxu0 %v779
    %803 = vmatprep.subr.bf16.mxu0 0
    %804 = vmatpush1.bf16.msra.mxu0 %v780
    %805 = vmatprep.subr.bf16.mxu0 0
    %806 = vmatpush1.bf16.msra.mxu0 0
    %807 = vmatprep.subr.bf16.mxu0 0
    %808 = vmatpush1.bf16.msra.mxu0 0
    %809 = vmatprep.subr.bf16.mxu0 0
    %810 = vmatpush1.bf16.msra.mxu0 0
    %811 = vmatprep.subr.bf16.mxu0 0
    %812 = vmatpush1.bf16.msra.mxu0 0
    %813 = vmatprep.subr.bf16.mxu0 0
    %814 = vmatpush1.bf16.msra.mxu0 0
    %815 = vmatprep.subr.bf16.mxu0 0
    %816 = vmatpush1.bf16.msra.mxu0 0
    %817 = vmatprep.subr.bf16.mxu0 0
    %818 = vmatpush1.bf16.msra.mxu0 0
    %819 = vmatprep.subr.bf16.mxu0 0
    %820 = vmatpush1.bf16.msra.mxu0 0
    %821 = vmatprep.mubr.bf16.mxu0 0
    %822 = vmatmul.mubr.bf16.gmra.mrb[0].mxu0 %v723
    %v823 = vpop.f32.mrb[0].mxu0
    %v824 = vadd.f32 %v740, %v823
    %v825 = vpop.f32.mrb[0].mxu0
    %v826 = vpop.f32.mrb[0].mxu0
    %v827 = vpop.f32.mrb[0].mxu0
    %828 = vdwg.mxu0
    %829 = vst [vmem:[%s10] sm:$0xff] %v824
    // Predicated region
    $region70: #{simlpe_forward.1} parent=1 // pred_check
      _
    $region71: #{simlpe_forward.1} parent=1 // pred_check_branch
      %831 = sbr.rel (0) target = $region73
    $region72: #{simlpe_forward.1} parent=1 // pred_region
      _
    $region73: #{simlpe_forward.1} parent=1 // pred_fallthru
      _
    // Predicated region
    $region74: #{simlpe_forward.1} parent=1 // pred_check
      _
    $region75: #{simlpe_forward.1} parent=1 // pred_check_branch
      %833 = sbr.rel (0) target = $region77
    $region76: #{simlpe_forward.1} parent=1 // pred_region
      _
    $region77: #{simlpe_forward.1} parent=1 // pred_fallthru
      _
    %834 = vsyncpa [#allocation3], 1
    %835 = vsyncpa [#allocation5], 1
    %836 = vsyncpa [#allocation8], 1
    %837 = vsyncpa [#allocation11], 1

</llo_original>
